<compile_context>
chip_gen: v6e
topology: v6e:2x2x1
jax: 0.10.0
libtpu: 0.0.40
codegen_flags: <defaults>
</compile_context>

<pallas_src>
import jax
import jax.numpy as jnp
from jax.experimental import pallas as pl
from jax.experimental.pallas import tpu as pltpu


def _spd_kernel(x_ref, sel_ref, o_ref):
    # x_ref:   (C, tH, tW)           current input tile (batch dim squeezed)
    # sel_ref: (tW, tW)              column-parity selector, resident across grid
    # o_ref:   (4*C, tH//2, tW//2)
    C, tH, tW = x_ref.shape
    Hh = tH // 2
    Wh = tW // 2

    sel = sel_ref[...]                                   # (tW, tW)

    # Row parity: stride-2 loads along the sublane (H) axis — cheap strided vld.
    x_even = x_ref[:, pl.ds(0, Hh, stride=2), :]         # rows 0,2,4,...  (C, Hh, tW)
    x_odd = x_ref[:, pl.ds(1, Hh, stride=2), :]          # rows 1,3,5,...  (C, Hh, tW)

    # Column parity: one fused MXU matmul per row-parity slab.
    # (C*Hh, tW) @ (tW, tW) -> first Wh cols = even columns, last Wh = odd columns.
    # With tW = 256 both halves are exactly 128 lanes (aligned, unmasked stores).
    ev = jnp.dot(x_even.reshape(C * Hh, tW), sel).reshape(C, Hh, tW)
    od = jnp.dot(x_odd.reshape(C * Hh, tW), sel).reshape(C, Hh, tW)

    # Channel order matches torch.cat([x[::2,::2], x[1::2,::2], x[::2,1::2], x[1::2,1::2]], 1)
    o_ref[0 * C:1 * C] = ev[:, :, :Wh]                   # even rows, even cols
    o_ref[1 * C:2 * C] = od[:, :, :Wh]                   # odd  rows, even cols
    o_ref[2 * C:3 * C] = ev[:, :, Wh:]                   # even rows, odd  cols
    o_ref[3 * C:4 * C] = od[:, :, Wh:]                   # odd  rows, odd  cols


def _column_selector(tW, dtype):
    """(tW, tW) 0/1 matrix: columns [0, tW/2) pick even lane indices, [tW/2, tW) odd.

    Parity is position-independent mod 2 and every W-tile starts at an even
    offset, so this single local selector serves all W-tiles.
    """
    Wh = tW // 2
    w = jnp.arange(tW, dtype=jnp.int32)[:, None]         # (tW, 1)
    q = jnp.arange(Wh, dtype=jnp.int32)[None, :]         # (1, Wh)
    even = w == 2 * q
    odd = w == 2 * q + 1
    return jnp.concatenate([even, odd], axis=1).astype(dtype)


def _physical_vmem_bytes():
    """Per-core VMEM capacity; conservative (v7x, 64 MiB) when unknown."""
    try:
        info = pltpu.get_tpu_info()
        v = getattr(info, "vmem_capacity_bytes", None)
        if v:
            return int(v)
    except Exception:
        pass
    return 64 * 1024 * 1024


def _choose_tiles(N, C, H, W, itemsize, budget_bytes):
    """Pick (tH, tW) such that blocks satisfy the (8,128) rule and fit the budget."""
    # --- W axis: tile only when both tW and tW//2 stay 128-lane aligned. ---
    tW = 256 if W % 256 == 0 else W

    # --- H axis: tH == H is always legal; otherwise tH % 16 == 0 (so tH and
    # tH//2 are sublane-aligned) and tH | H (no ragged blocks, even row start).
    cands = {H}
    if H % 16 == 0:
        cands.update(th for th in range(16, H, 16) if H % th == 0)
    cands = sorted(cands)

    def step_bytes(th):
        # input block + equal-sized output block, each double-buffered.
        return 4 * C * th * tW * itemsize

    fitting = [th for th in cands if step_bytes(th) <= budget_bytes]
    tH = max(fitting) if fitting else min(cands)

    # v7x has 2 TensorCores: make sure the ("parallel", ...) grid has at least
    # two points when possible (harmless on single-TC v5e/v6e).
    if N * (H // tH) * (W // tW) < 2:
        smaller = [th for th in cands if th < tH and step_bytes(th) <= budget_bytes]
        if smaller:
            tH = max(smaller)

    return tH, tW


def spd(x):
    """Pallas SPD: (N, C, H, W) -> (N, 4C, H//2, W//2). Matches the torch.cat order."""
    N, C, H, W = x.shape
    assert H % 2 == 0 and W % 2 == 0, "H and W must be even"
    assert jnp.issubdtype(x.dtype, jnp.floating), (
        "SPD Pallas kernel supports floating dtypes only "
        "(integer inputs would need a non-MXU de-interleave)")
    Hh, Wh = H // 2, W // 2

    itemsize = jnp.dtype(x.dtype).itemsize
    phys_vmem = _physical_vmem_bytes()
    # ~16 MiB of in+out blocks on 128 MiB parts (v5e/v6e), ~8 MiB on v7x.
    budget = max(phys_vmem // 8, 4 * 1024 * 1024)

    tH, tW = _choose_tiles(N, C, H, W, itemsize, budget)
    tHh, tWh = tH // 2, tW // 2
    sel = _column_selector(tW, x.dtype)

    # VMEM accounting: double-buffered input + output blocks plus the selector
    # (constant index_map -> fetched once, but two buffers are still allocated).
    block_bytes = 4 * C * tH * tW * itemsize + 2 * tW * tW * itemsize
    vmem_limit = min(int(phys_vmem * 0.9),
                     max(32 * 1024 * 1024, block_bytes + block_bytes // 4 + (1 << 20)))
    if block_bytes > vmem_limit:
        raise ValueError(
            f"SPD blocks need {block_bytes} bytes of VMEM but the limit is "
            f"{vmem_limit} bytes; shape {(N, C, H, W)} admits no fitting H/W tiling.")

    return pl.pallas_call(
        _spd_kernel,
        out_shape=jax.ShapeDtypeStruct((N, 4 * C, Hh, Wh), x.dtype),
        grid_spec=pltpu.PrefetchScalarGridSpec(
            num_scalar_prefetch=0,
            grid=(N, H // tH, W // tW),
            in_specs=[
                # Batch dim squeezed out of the kernel view.
                pl.BlockSpec((None, C, tH, tW), lambda n, h, w: (n, 0, h, w)),
                # Selector: same block for every grid point -> stays resident.
                pl.BlockSpec((tW, tW), lambda n, h, w: (0, 0)),
            ],
            out_specs=pl.BlockSpec((None, 4 * C, tHh, tWh),
                                   lambda n, h, w: (n, 0, h, w)),
        ),
        compiler_params=pltpu.CompilerParams(
            dimension_semantics=("parallel", "parallel", "parallel"),
            vmem_limit_bytes=vmem_limit,
        ),
    )(x, sel)


def spd_reference(x):
    # Pure-JAX reference mirroring the PyTorch forward.
    return jnp.concatenate(
        [x[..., ::2, ::2], x[..., 1::2, ::2], x[..., ::2, 1::2], x[..., 1::2, 1::2]],
        axis=1,
    )


if __name__ == "__main__":
    key = jax.random.PRNGKey(0)
    x = jax.random.normal(key, (2, 4, 16, 16), dtype=jnp.float32)

    out = jax.block_until_ready(spd(x))

    ref = spd_reference(x)
    assert out.shape == (2, 16, 8, 8), out.shape
    assert jnp.allclose(out, ref, atol=1e-6, rtol=1e-6), "mismatch vs reference"

    print("KERNEL_OK")
</pallas_src>

<mosaic_0001>
module attributes {stable_mosaic.version = 11 : i64} {
  func.func @_spd_kernel(%arg0: i32, %arg1: i32, %arg2: i32, %arg3: memref<1x4x16x16xf32, #tpu.memory_space<vmem>>, %arg4: memref<16x16xf32, #tpu.memory_space<vmem>>, %arg5: memref<1x16x8x8xf32, #tpu.memory_space<vmem>>) attributes {dimension_semantics = [#tpu.dimension_semantics<parallel>, #tpu.dimension_semantics<parallel>, #tpu.dimension_semantics<parallel>], iteration_bounds = array<i64: 2, 1, 1>, scalar_prefetch = 0 : i64, scratch_operands = 0 : i64, tpu.core_type = #tpu.core_type<tc>, window_params = [{transform_indices = @transform_0, window_bounds = array<i64: 1, 4, 16, 16>}, {pipeline_mode = #tpu.pipeline_mode<synchronous>, transform_indices = @transform_1, window_bounds = array<i64: 16, 16>}, {transform_indices = @transform_2, window_bounds = array<i64: 1, 16, 8, 8>}]} {
    %c0 = arith.constant 0 : index
    %c0_0 = arith.constant 0 : index
    %0 = vector.load %arg4[%c0, %c0_0] : memref<16x16xf32, #tpu.memory_space<vmem>>, vector<16x16xf32>
    %c0_1 = arith.constant 0 : index
    %c0_2 = arith.constant 0 : index
    %c0_3 = arith.constant 0 : index
    %c0_4 = arith.constant 0 : index
    %1 = tpu.strided_load %arg3[%c0_1, %c0_2, %c0_3, %c0_4] {strides = array<i32: 1, 1, 2, 1>} : memref<1x4x16x16xf32, #tpu.memory_space<vmem>>, vector<1x4x8x16xf32>
    %2 = vector.shape_cast %1 : vector<1x4x8x16xf32> to vector<4x8x16xf32>
    %c0_5 = arith.constant 0 : index
    %c0_6 = arith.constant 0 : index
    %c1 = arith.constant 1 : index
    %c0_7 = arith.constant 0 : index
    %3 = tpu.strided_load %arg3[%c0_5, %c0_6, %c1, %c0_7] {strides = array<i32: 1, 1, 2, 1>} : memref<1x4x16x16xf32, #tpu.memory_space<vmem>>, vector<1x4x8x16xf32>
    %4 = vector.shape_cast %3 : vector<1x4x8x16xf32> to vector<4x8x16xf32>
    %5 = vector.shape_cast %2 : vector<4x8x16xf32> to vector<32x16xf32>
    %cst = arith.constant dense<0.000000e+00> : vector<32x16xf32>
    %6 = tpu.matmul %5, %0, %cst {dimension_numbers = #tpu.dot_dimension_numbers<[1], [0], [0], [1], [0, 0, 1, 1], [], []>} : vector<32x16xf32>, vector<16x16xf32>, vector<32x16xf32> -> vector<32x16xf32>
    %7 = vector.shape_cast %6 : vector<32x16xf32> to vector<4x8x16xf32>
    %8 = vector.shape_cast %4 : vector<4x8x16xf32> to vector<32x16xf32>
    %cst_8 = arith.constant dense<0.000000e+00> : vector<32x16xf32>
    %9 = tpu.matmul %8, %0, %cst_8 {dimension_numbers = #tpu.dot_dimension_numbers<[1], [0], [0], [1], [0, 0, 1, 1], [], []>} : vector<32x16xf32>, vector<16x16xf32>, vector<32x16xf32> -> vector<32x16xf32>
    %10 = vector.shape_cast %9 : vector<32x16xf32> to vector<4x8x16xf32>
    %11 = vector.extract_strided_slice %7 {offsets = [0, 0, 0], sizes = [4, 8, 8], strides = [1, 1, 1]} : vector<4x8x16xf32> to vector<4x8x8xf32>
    %c0_9 = arith.constant 0 : index
    %c0_10 = arith.constant 0 : index
    %c0_11 = arith.constant 0 : index
    %c0_12 = arith.constant 0 : index
    %12 = vector.load %arg5[%c0_9, %c0_10, %c0_11, %c0_12] : memref<1x16x8x8xf32, #tpu.memory_space<vmem>>, vector<1x4x8x8xf32>
    %13 = vector.shape_cast %12 : vector<1x4x8x8xf32> to vector<4x8x8xf32>
    %14 = vector.shape_cast %11 : vector<4x8x8xf32> to vector<1x4x8x8xf32>
    tpu.vector_store %arg5[%c0_9, %c0_10, %c0_11, %c0_12], %14 {strides = array<i32>} : memref<1x16x8x8xf32, #tpu.memory_space<vmem>>, vector<1x4x8x8xf32>,
    %15 = vector.extract_strided_slice %10 {offsets = [0, 0, 0], sizes = [4, 8, 8], strides = [1, 1, 1]} : vector<4x8x16xf32> to vector<4x8x8xf32>
    %c0_13 = arith.constant 0 : index
    %c4 = arith.constant 4 : index
    %c0_14 = arith.constant 0 : index
    %c0_15 = arith.constant 0 : index
    %16 = vector.load %arg5[%c0_13, %c4, %c0_14, %c0_15] : memref<1x16x8x8xf32, #tpu.memory_space<vmem>>, vector<1x4x8x8xf32>
    %17 = vector.shape_cast %16 : vector<1x4x8x8xf32> to vector<4x8x8xf32>
    %18 = vector.shape_cast %15 : vector<4x8x8xf32> to vector<1x4x8x8xf32>
    tpu.vector_store %arg5[%c0_13, %c4, %c0_14, %c0_15], %18 {strides = array<i32>} : memref<1x16x8x8xf32, #tpu.memory_space<vmem>>, vector<1x4x8x8xf32>,
    %19 = vector.extract_strided_slice %7 {offsets = [0, 0, 8], sizes = [4, 8, 8], strides = [1, 1, 1]} : vector<4x8x16xf32> to vector<4x8x8xf32>
    %c0_16 = arith.constant 0 : index
    %c8 = arith.constant 8 : index
    %c0_17 = arith.constant 0 : index
    %c0_18 = arith.constant 0 : index
    %20 = vector.load %arg5[%c0_16, %c8, %c0_17, %c0_18] : memref<1x16x8x8xf32, #tpu.memory_space<vmem>>, vector<1x4x8x8xf32>
    %21 = vector.shape_cast %20 : vector<1x4x8x8xf32> to vector<4x8x8xf32>
    %22 = vector.shape_cast %19 : vector<4x8x8xf32> to vector<1x4x8x8xf32>
    tpu.vector_store %arg5[%c0_16, %c8, %c0_17, %c0_18], %22 {strides = array<i32>} : memref<1x16x8x8xf32, #tpu.memory_space<vmem>>, vector<1x4x8x8xf32>,
    %23 = vector.extract_strided_slice %10 {offsets = [0, 0, 8], sizes = [4, 8, 8], strides = [1, 1, 1]} : vector<4x8x16xf32> to vector<4x8x8xf32>
    %c0_19 = arith.constant 0 : index
    %c12 = arith.constant 12 : index
    %c0_20 = arith.constant 0 : index
    %c0_21 = arith.constant 0 : index
    %24 = vector.load %arg5[%c0_19, %c12, %c0_20, %c0_21] : memref<1x16x8x8xf32, #tpu.memory_space<vmem>>, vector<1x4x8x8xf32>
    %25 = vector.shape_cast %24 : vector<1x4x8x8xf32> to vector<4x8x8xf32>
    %26 = vector.shape_cast %23 : vector<4x8x8xf32> to vector<1x4x8x8xf32>
    tpu.vector_store %arg5[%c0_19, %c12, %c0_20, %c0_21], %26 {strides = array<i32>} : memref<1x16x8x8xf32, #tpu.memory_space<vmem>>, vector<1x4x8x8xf32>,
    return
  }
  func.func @transform_0(%arg0: i32, %arg1: i32, %arg2: i32) -> (i32, i32, i32, i32) {
    %c0_i32 = arith.constant 0 : i32
    %c0_i32_0 = arith.constant 0 : i32
    return %arg0, %c0_i32, %arg1, %arg2 : i32, i32, i32, i32
  }
  func.func @transform_1(%arg0: i32, %arg1: i32, %arg2: i32) -> (i32, i32) {
    %c0_i32 = arith.constant 0 : i32
    %c0_i32_0 = arith.constant 0 : i32
    %c0_i32_1 = arith.constant 0 : i32
    return %c0_i32, %c0_i32_0 : i32, i32
  }
  func.func @transform_2(%arg0: i32, %arg1: i32, %arg2: i32) -> (i32, i32, i32, i32) {
    %c0_i32 = arith.constant 0 : i32
    %c0_i32_0 = arith.constant 0 : i32
    return %arg0, %c0_i32, %arg1, %arg2 : i32, i32, i32, i32
  }
}

</mosaic_0001>

<llo_original>
// kernel: tpu_custom_call.1
$region0: #{tpu_custom_call.1}
  #allocation0 [shape = 'u32[]', space=smem, size = 0x4, offset = 0x4, fixed_abs, tag = 'smem constant byte address 0x4 - core index']
  #allocation1 [shape = 'u32[144,128]{1,0:T(1,128)}', space=vmem, size = 0x12000, scoped, tag = 'internal scratch']
  %s0 = inlined_call_operand.hbm [shape: f32[2,4,16,16], index: 0, kind: input, shape index: {}]
  %s1 = inlined_call_operand.hbm [shape: f32[16,16], index: 1, kind: input, shape index: {}]
  %s2 = inlined_call_operand.vmem [shape: f32[2,16,8,8], index: 2, kind: output, shape index: {}]
  %s3 = sld [smem:[#allocation0]]
  $region49: #{tpu_custom_call.1} parent=0
    _
  %s5 = ssub.s32 1, %s3
  %s6 = scalar_select 0, %s5, %s3
  $region1: #{tpu_custom_call.1} parent=0
    #allocation2 [shape = 'u8[65536]{0}', space=vmem, size = 0x10000, scoped, tag = 'input window, operand 0']
    #allocation3 [shape = 's32[2]{0}', space=sflag, size = 0x8, scoped, tag = 'scoped memory for tpu_custom_call.1']
    #allocation4 [shape = 'u8[8192]{0}', space=vmem, size = 0x2000, scoped, tag = 'input window, operand 1, single buffered']
    #allocation5 [shape = 's32[1]{0}', space=sflag, size = 0x4, scoped, tag = 'scoped memory for tpu_custom_call.1']
    %7 = vsyncpa [#allocation3], 0
    %s8 = scalar_lea.sflag [#allocation3], 1
    %9 = vsyncpa %s8, 0
    %10 = vsyncpa [#allocation5], 0
    loop: start=0, step=1, limit=4
    $region2: #{tpu_custom_call.1} parent=1 // loop_pre_header
      _
    $region3: #{tpu_custom_call.1} parent=1 // loop_header
      %s12 = sphi 0, %s16
      %p13 = scmp.ge.s32.totalorder %s12, 4
      %s19 = sphi 0, %s38
      %s20 = sphi 0, %s34
      %s21 = sphi 0, %s30
      %s22 = sphi 0, %s19
      %s23 = sphi 0, %s20
      %s24 = sphi 0, %s21
      %s25 = sphi 0, %s22
      %s26 = sphi 0, %s23
      %s27 = sphi 0, %s24
      %s45 = sphi 0, %s47
      %s48 = sphi 0, %s45
      %s49 = sphi 0, %s48
      %s65 = sphi 0, %s49
      %s69 = sphi 0, %s69
      %s71 = sphi 0, %s69
      %s72 = sphi 0, %s71
      %s86 = sphi 0, %s72
      %s96 = sphi 0, %s98
      %s99 = sphi 0, %s96
      %s100 = sphi 0, %s99
      %s116 = sphi 0, %s100
    $region4: #{tpu_custom_call.1} parent=1 // loop_header_branch
      %15 = sbr.rel (%p13) target = $region8
    $region5: #{tpu_custom_call.1} parent=1 // loop_body
      %s17 = ssub.s32 %s12, 1
      %s18 = ssub.s32 %s12, 2
      %s28 = sadd.s32 1, %s21
      %p29 = scmp.ge.s32.totalorder %s28, 1
      %s30 = scalar_select %p29, 0, %s28
      %s31 = sadd.s32 1, %s20
      %s32 = scalar_select %p29, %s31, %s20
      %p33 = scmp.ge.s32.totalorder %s32, 1
      %s34 = scalar_select %p33, 0, %s32
      %s35 = sadd.s32 1, %s19
      %s36 = scalar_select %p33, %s35, %s19
      %p37 = scmp.ge.s32.totalorder %s36, 2
      %s38 = scalar_select %p37, 0, %s36
      %s39 = ssub.s32 %s19, %s38
      %s40 = ssub.s32 %s20, %s34
      %s41 = sor.u32 %s39, %s40
      %s42 = ssub.s32 %s21, %s30
      %s43 = sor.u32 %s41, %s42
      %p44 = scmp.eq.s32.totalorder %s43, 0
      %s46 = sadd.s32 %s45, 1
      %s47 = scalar_select %p44, %s45, %s46
      %p50 = pneg %p44
      %p51 = scmp.eq.s32.totalorder %s12, 1
      %p52 = por %p50, %p51
      %p53 = scmp.ne.s32.totalorder %s45, %s48
      %p54 = scmp.eq.s32.totalorder %s12, 0
      %p55 = por %p53, %p54
      %p56 = scmp.ne.s32.totalorder %s45, %s48
      %p57 = scmp.eq.s32.totalorder %s17, 1
      %p58 = por %p56, %p57
      %p59 = scmp.ne.s32.totalorder %s48, %s49
      %p60 = scmp.eq.s32.totalorder %s17, 0
      %p61 = por %p59, %p60
      %p62 = scmp.ne.s32.totalorder %s48, %s49
      %p63 = scmp.eq.s32.totalorder %s18, 1
      %p64 = por %p62, %p63
      %p66 = scmp.ne.s32.totalorder %s49, %s65
      %p67 = scmp.eq.s32.totalorder %s18, 0
      %p68 = por %p66, %p67
      %s70 = sadd.s32 %s69, 1
      %p73 = scmp.eq.s32.totalorder %s12, 1
      %p74 = scmp.ne.s32.totalorder %s69, %s71
      %p75 = scmp.eq.s32.totalorder %s12, 0
      %p76 = por %p74, %p75
      %p77 = scmp.ne.s32.totalorder %s69, %s71
      %p78 = scmp.eq.s32.totalorder %s17, 1
      %p79 = por %p77, %p78
      %p80 = scmp.ne.s32.totalorder %s71, %s72
      %p81 = scmp.eq.s32.totalorder %s17, 0
      %p82 = por %p80, %p81
      %p83 = scmp.ne.s32.totalorder %s71, %s72
      %p84 = scmp.eq.s32.totalorder %s18, 1
      %p85 = por %p83, %p84
      %p87 = scmp.ne.s32.totalorder %s72, %s86
      %p88 = scmp.eq.s32.totalorder %s18, 0
      %p89 = por %p87, %p88
      %s90 = ssub.s32 %s19, %s38
      %s91 = ssub.s32 %s20, %s34
      %s92 = sor.u32 %s90, %s91
      %s93 = ssub.s32 %s21, %s30
      %s94 = sor.u32 %s92, %s93
      %p95 = scmp.eq.s32.totalorder %s94, 0
      %s97 = sadd.s32 %s96, 1
      %s98 = scalar_select %p95, %s96, %s97
      %p101 = pneg %p95
      %p102 = scmp.eq.s32.totalorder %s12, 1
      %p103 = por %p101, %p102
      %p104 = scmp.ne.s32.totalorder %s96, %s99
      %p105 = scmp.eq.s32.totalorder %s12, 0
      %p106 = por %p104, %p105
      %p107 = scmp.ne.s32.totalorder %s96, %s99
      %p108 = scmp.eq.s32.totalorder %s17, 1
      %p109 = por %p107, %p108
      %p110 = scmp.ne.s32.totalorder %s99, %s100
      %p111 = scmp.eq.s32.totalorder %s17, 0
      %p112 = por %p110, %p111
      %p113 = scmp.ne.s32.totalorder %s99, %s100
      %p114 = scmp.eq.s32.totalorder %s18, 1
      %p115 = por %p113, %p114
      %p117 = scmp.ne.s32.totalorder %s100, %s116
      %p118 = scmp.eq.s32.totalorder %s18, 0
      %p119 = por %p117, %p118
      %p120 = scmp.le.s32.totalorder 1, %s12
      %p121 = scmp.lt.s32.totalorder %s12, 3
      %p122 = pnand %p120, %p121
      %p123 = pneg %p122
      // Predicated region
      $region9: #{tpu_custom_call.1} parent=5 // pred_check
        _
      $region10: #{tpu_custom_call.1} parent=5 // pred_check_branch
        %125 = sbr.rel (%p122) target = $region12
      $region11: #{tpu_custom_call.1} parent=5 // pred_region
        %s126 = ssub.s32 %s12, 1
        // Predicated region
        $region13: #{tpu_custom_call.1} parent=11 // pred_check
          %p127 = pneg %p82
        $region14: #{tpu_custom_call.1} parent=11 // pred_check_branch
          %129 = sbr.rel (%p127) target = $region16
        $region15: #{tpu_custom_call.1} parent=11 // pred_region
          %s131 = ssub.s32 256, 256
          %132 = vsyncadd [#allocation5], %s131
          %s133 = sshll.u32 [#allocation4], 4
          %s134 = int_to_ptr.vmem [resolvable:$true] %s133
          %139 = dma.hbm_to_vmem [thread:$0]  %s1, 256, %s134, [#allocation5], 128, 128, 8
        $region16: #{tpu_custom_call.1} parent=11 // pred_fallthru
          _
      $region12: #{tpu_custom_call.1} parent=5 // pred_fallthru
        _
      %p140 = scmp.lt.s32.totalorder %s12, 2
      // Predicated region
      $region17: #{tpu_custom_call.1} parent=5 // pred_check
        %p141 = pneg %p140
      $region18: #{tpu_custom_call.1} parent=5 // pred_check_branch
        %143 = sbr.rel (%p141) target = $region20
      $region19: #{tpu_custom_call.1} parent=5 // pred_region
        // Predicated region
        $region21: #{tpu_custom_call.1} parent=19 // pred_check
          %p144 = pneg %p55
        $region22: #{tpu_custom_call.1} parent=19 // pred_check_branch
          %146 = sbr.rel (%p144) target = $region24
        $region23: #{tpu_custom_call.1} parent=19 // pred_region
          %s147 = sand.u32 %s45, 1
          %s148 = scalar_lea.sflag [#allocation3], %s147
          %s149 = sand.u32 %s45, 1
          %s150 = smul.addr %s149, 64
          %s151 = scalar_lea.vmem [#allocation2], %s150
          %s152 = smul.u32 2, %s20
          %s154 = ssub.s32 1024, 1024
          %155 = vsyncadd %s148, %s154
          %s156 = sadd.s32 %s21, %s152
          %s157 = smul.addr %s19, 8
          %s158 = sadd.s32 %s156, %s157
          %s159 = smul.addr %s158, 128
          %s160 = scalar_lea.hbm %s0, %s159
          %s161 = sshll.u32 %s151, 4
          %s162 = int_to_ptr.vmem [resolvable:$true] %s161
          %167 = dma.hbm_to_vmem [thread:$0]  %s160, 1024, %s162, %s148, 128, 128, 8
        $region24: #{tpu_custom_call.1} parent=19 // pred_fallthru
          _
      $region20: #{tpu_custom_call.1} parent=5 // pred_fallthru
        _
      %p168 = scmp.le.s32.totalorder 1, %s12
      %p169 = scmp.lt.s32.totalorder %s12, 3
      %p170 = pnand %p168, %p169
      %p171 = pneg %p170
      // Predicated region
      $region25: #{tpu_custom_call.1} parent=5 // pred_check
        _
      $region26: #{tpu_custom_call.1} parent=5 // pred_check_branch
        %173 = sbr.rel (%p170) target = $region28
      $region27: #{tpu_custom_call.1} parent=5 // pred_region
        %s174 = ssub.s32 %s12, 1
        %s175 = sand.u32 %s48, 1
        %s176 = scalar_lea.sflag [#allocation3], %s175
        %s177 = sand.u32 %s48, 1
        %s178 = smul.addr %s177, 64
        %s179 = scalar_lea.vmem [#allocation2], %s178
        // Predicated region
        $region29: #{tpu_custom_call.1} parent=27 // pred_check
          %p180 = pneg %p61
        $region30: #{tpu_custom_call.1} parent=27 // pred_check_branch
          %182 = sbr.rel (%p180) target = $region32
        $region31: #{tpu_custom_call.1} parent=27 // pred_region
          %183 = dma.done %s176, 1024
        $region32: #{tpu_custom_call.1} parent=27 // pred_fallthru
          _
        // Predicated region
        $region33: #{tpu_custom_call.1} parent=27 // pred_check
          %p184 = pneg %p82
        $region34: #{tpu_custom_call.1} parent=27 // pred_check_branch
          %186 = sbr.rel (%p184) target = $region36
        $region35: #{tpu_custom_call.1} parent=27 // pred_region
          %187 = dma.done [#allocation5], 256
        $region36: #{tpu_custom_call.1} parent=27 // pred_fallthru
          _
        %s188 = sand.u32 %s48, 1
        %s189 = scalar_lea.sflag [#allocation3], %s188
        %s190 = sand.u32 %s48, 1
        %s191 = smul.addr %s190, 64
        %s192 = scalar_lea.vmem [#allocation2], %s191
        %p193 = pneg %p61
        %p194 = pneg %p58
        %p195 = pneg %p82
        %p196 = pneg %p79
        %p197 = pneg %p112
        %p198 = pneg %p109
        %p199 = scmp.lt.s32.totalorder %s22, 1
        %s200 = scalar_select %p199, %s22, 1
        %p201 = scmp.lt.s32.totalorder %s23, 0
        %s202 = scalar_select %p201, %s23, 0
        %p203 = scmp.lt.s32.totalorder %s24, 0
        %s204 = scalar_select %p203, %s24, 0
        %s205 = sadd.s32 %s204, %s202
        %s206 = smul.addr %s200, 16
        %s207 = sadd.s32 %s205, %s206
        %s208 = smul.addr %s207, 8
        %s209 = scalar_lea.vmem %s2, %s208
        %s210 = smul.u32 2, %s23
        %p211 = scmp.lt.s32.totalorder %s22, 1
        %s212 = scalar_select %p211, %s22, 1
        %p213 = scmp.lt.s32.totalorder %s23, 0
        %s214 = scalar_select %p213, %s23, 0
        %p215 = scmp.lt.s32.totalorder %s24, 0
        %s216 = scalar_select %p215, %s24, 0
        %s217 = sadd.s32 %s216, %s214
        %s218 = smul.addr %s212, 16
        %s219 = sadd.s32 %s217, %s218
        %s220 = smul.addr %s219, 8
        %s221 = scalar_lea.vmem %s2, %s220
        %v222 = vld [vmem:[#allocation4] sm:$0xff]
        %v223 = vld [vmem:[#allocation4 + $0x8] sm:$0xff]
        %v224 = vld [vmem:[%s179] ss:$2 sm:$0xff]
        %s225 = scalar_lea.vmem %s179, 16 [#allocation2]
        %v226 = vld [vmem:[%s225] ss:$2 sm:$0xff]
        %s227 = scalar_lea.vmem %s179, 32 [#allocation2]
        %v228 = vld [vmem:[%s227] ss:$2 sm:$0xff]
        %s229 = scalar_lea.vmem %s179, 48 [#allocation2]
        %v230 = vld [vmem:[%s229] ss:$2 sm:$0xff]
        %s231 = scalar_lea.vmem %s179, 1 [#allocation2]
        %v232 = vld [vmem:[%s231] ss:$2 sm:$0xff]
        %s233 = scalar_lea.vmem %s179, 17 [#allocation2]
        %v234 = vld [vmem:[%s233] ss:$2 sm:$0xff]
        %s235 = scalar_lea.vmem %s179, 33 [#allocation2]
        %v236 = vld [vmem:[%s235] ss:$2 sm:$0xff]
        %s237 = scalar_lea.vmem %s179, 49 [#allocation2]
        %v238 = vld [vmem:[%s237] ss:$2 sm:$0xff]
        %vm239 = vcmask 130048
        %v241 = vsel %vm239, %v224, 0
        %v244 = vsel %vm239, %v226, 0
        %v247 = vsel %vm239, %v228, 0
        %v250 = vsel %vm239, %v230, 0
        %252 = vmatprep.subr.mxu0 0.0
        %253 = vmatpush1.msra.mxu0 0.0
        %254 = vmatprep.subr.mxu0 0.0
        %255 = vmatpush1.msra.mxu0 0.0
        %256 = vmatprep.subr.mxu0 0.0
        %257 = vmatpush1.msra.mxu0 0.0
        %258 = vmatprep.subr.mxu0 0.0
        %259 = vmatpush1.msra.mxu0 0.0
        %260 = vmatprep.subr.mxu0 0.0
        %261 = vmatpush1.msra.mxu0 0.0
        %262 = vmatprep.subr.mxu0 0.0
        %263 = vmatpush1.msra.mxu0 0.0
        %264 = vmatprep.subr.mxu0 0.0
        %265 = vmatpush1.msra.mxu0 0.0
        %266 = vmatprep.subr.mxu0 0.0
        %267 = vmatpush1.msra.mxu0 0.0
        %268 = vmatprep.subr.mxu0 0.0
        %269 = vmatpush1.msra.mxu0 0.0
        %270 = vmatprep.subr.mxu0 0.0
        %271 = vmatpush1.msra.mxu0 0.0
        %272 = vmatprep.subr.mxu0 0.0
        %273 = vmatpush1.msra.mxu0 0.0
        %274 = vmatprep.subr.mxu0 0.0
        %275 = vmatpush1.msra.mxu0 0.0
        %276 = vmatprep.subr.mxu0 0.0
        %277 = vmatpush1.msra.mxu0 0.0
        %278 = vmatprep.subr.mxu0 0.0
        %279 = vmatpush1.msra.mxu0 0.0
        %280 = vmatprep.subr.mxu0 0.0
        %281 = vmatpush1.msra.mxu0 %v223
        %282 = vmatprep.subr.mxu0 0.0
        %283 = vmatpush1.msra.mxu0 %v222
        %284 = vmatprep.subr.mxu0 0.0
        %285 = vmatpush2.msra.mxu0 0.0
        %286 = vmatprep.subr.mxu0 0.0
        %287 = vmatpush2.msra.mxu0 0.0
        %288 = vmatprep.subr.mxu0 0.0
        %289 = vmatpush2.msra.mxu0 0.0
        %290 = vmatprep.subr.mxu0 0.0
        %291 = vmatpush2.msra.mxu0 0.0
        %292 = vmatprep.subr.mxu0 0.0
        %293 = vmatpush2.msra.mxu0 0.0
        %294 = vmatprep.subr.mxu0 0.0
        %295 = vmatpush2.msra.mxu0 0.0
        %296 = vmatprep.subr.mxu0 0.0
        %297 = vmatpush2.msra.mxu0 0.0
        %298 = vmatprep.subr.mxu0 0.0
        %299 = vmatpush2.msra.mxu0 0.0
        %300 = vmatprep.subr.mxu0 0.0
        %301 = vmatpush2.msra.mxu0 0.0
        %302 = vmatprep.subr.mxu0 0.0
        %303 = vmatpush2.msra.mxu0 0.0
        %304 = vmatprep.subr.mxu0 0.0
        %305 = vmatpush2.msra.mxu0 0.0
        %306 = vmatprep.subr.mxu0 0.0
        %307 = vmatpush2.msra.mxu0 0.0
        %308 = vmatprep.subr.mxu0 0.0
        %309 = vmatpush2.msra.mxu0 0.0
        %310 = vmatprep.subr.mxu0 0.0
        %311 = vmatpush2.msra.mxu0 0.0
        %312 = vmatprep.subr.mxu0 0.0
        %313 = vmatpush2.msra.mxu0 0.0
        %314 = vmatprep.subr.mxu0 0.0
        %315 = vmatpush2.msra.mxu0 0.0
        %316 = vmatprep.mubr.f32.mxu0 0.0
        %317 = vmatmul.mubr.f32.gmra.mxu0 %v241
        %v318 = vpop.f32.mrf.mxu0
        %v319 = vadd.f32 0.0, %v318
        %v320 = vpop.f32.mrf.mxu0
        %321 = vmatprep.mubr.f32.mxu0 0.0
        %322 = vmatmul.mubr.f32.gmra.mxu0 %v244
        %v323 = vpop.f32.mrf.mxu0
        %v324 = vadd.f32 0.0, %v323
        %v325 = vpop.f32.mrf.mxu0
        %326 = vmatprep.mubr.f32.mxu0 0.0
        %327 = vmatmul.mubr.f32.gmra.mxu0 %v247
        %v328 = vpop.f32.mrf.mxu0
        %v329 = vadd.f32 0.0, %v328
        %v330 = vpop.f32.mrf.mxu0
        %331 = vmatprep.mubr.f32.mxu0 0.0
        %332 = vmatmul.mubr.f32.gmra.mxu0 %v250
        %v333 = vpop.f32.mrf.mxu0
        %v334 = vadd.f32 0.0, %v333
        %v335 = vpop.f32.mrf.mxu0
        %336 = vdwg.mxu0
        %v338 = vsel %vm239, %v232, 0
        %v341 = vsel %vm239, %v234, 0
        %v344 = vsel %vm239, %v236, 0
        %v347 = vsel %vm239, %v238, 0
        %349 = vmatprep.subr.mxu0 0.0
        %350 = vmatpush1.msra.mxu0 0.0
        %351 = vmatprep.subr.mxu0 0.0
        %352 = vmatpush1.msra.mxu0 0.0
        %353 = vmatprep.subr.mxu0 0.0
        %354 = vmatpush1.msra.mxu0 0.0
        %355 = vmatprep.subr.mxu0 0.0
        %356 = vmatpush1.msra.mxu0 0.0
        %357 = vmatprep.subr.mxu0 0.0
        %358 = vmatpush1.msra.mxu0 0.0
        %359 = vmatprep.subr.mxu0 0.0
        %360 = vmatpush1.msra.mxu0 0.0
        %361 = vmatprep.subr.mxu0 0.0
        %362 = vmatpush1.msra.mxu0 0.0
        %363 = vmatprep.subr.mxu0 0.0
        %364 = vmatpush1.msra.mxu0 0.0
        %365 = vmatprep.subr.mxu0 0.0
        %366 = vmatpush1.msra.mxu0 0.0
        %367 = vmatprep.subr.mxu0 0.0
        %368 = vmatpush1.msra.mxu0 0.0
        %369 = vmatprep.subr.mxu0 0.0
        %370 = vmatpush1.msra.mxu0 0.0
        %371 = vmatprep.subr.mxu0 0.0
        %372 = vmatpush1.msra.mxu0 0.0
        %373 = vmatprep.subr.mxu0 0.0
        %374 = vmatpush1.msra.mxu0 0.0
        %375 = vmatprep.subr.mxu0 0.0
        %376 = vmatpush1.msra.mxu0 0.0
        %377 = vmatprep.subr.mxu0 0.0
        %378 = vmatpush1.msra.mxu0 %v223
        %379 = vmatprep.subr.mxu0 0.0
        %380 = vmatpush1.msra.mxu0 %v222
        %381 = vmatprep.subr.mxu0 0.0
        %382 = vmatpush2.msra.mxu0 0.0
        %383 = vmatprep.subr.mxu0 0.0
        %384 = vmatpush2.msra.mxu0 0.0
        %385 = vmatprep.subr.mxu0 0.0
        %386 = vmatpush2.msra.mxu0 0.0
        %387 = vmatprep.subr.mxu0 0.0
        %388 = vmatpush2.msra.mxu0 0.0
        %389 = vmatprep.subr.mxu0 0.0
        %390 = vmatpush2.msra.mxu0 0.0
        %391 = vmatprep.subr.mxu0 0.0
        %392 = vmatpush2.msra.mxu0 0.0
        %393 = vmatprep.subr.mxu0 0.0
        %394 = vmatpush2.msra.mxu0 0.0
        %395 = vmatprep.subr.mxu0 0.0
        %396 = vmatpush2.msra.mxu0 0.0
        %397 = vmatprep.subr.mxu0 0.0
        %398 = vmatpush2.msra.mxu0 0.0
        %399 = vmatprep.subr.mxu0 0.0
        %400 = vmatpush2.msra.mxu0 0.0
        %401 = vmatprep.subr.mxu0 0.0
        %402 = vmatpush2.msra.mxu0 0.0
        %403 = vmatprep.subr.mxu0 0.0
        %404 = vmatpush2.msra.mxu0 0.0
        %405 = vmatprep.subr.mxu0 0.0
        %406 = vmatpush2.msra.mxu0 0.0
        %407 = vmatprep.subr.mxu0 0.0
        %408 = vmatpush2.msra.mxu0 0.0
        %409 = vmatprep.subr.mxu0 0.0
        %410 = vmatpush2.msra.mxu0 0.0
        %411 = vmatprep.subr.mxu0 0.0
        %412 = vmatpush2.msra.mxu0 0.0
        %413 = vmatprep.mubr.f32.mxu0 0.0
        %414 = vmatmul.mubr.f32.gmra.mxu0 %v338
        %v415 = vpop.f32.mrf.mxu0
        %v416 = vadd.f32 0.0, %v415
        %v417 = vpop.f32.mrf.mxu0
        %418 = vmatprep.mubr.f32.mxu0 0.0
        %419 = vmatmul.mubr.f32.gmra.mxu0 %v341
        %v420 = vpop.f32.mrf.mxu0
        %v421 = vadd.f32 0.0, %v420
        %v422 = vpop.f32.mrf.mxu0
        %423 = vmatprep.mubr.f32.mxu0 0.0
        %424 = vmatmul.mubr.f32.gmra.mxu0 %v344
        %v425 = vpop.f32.mrf.mxu0
        %v426 = vadd.f32 0.0, %v425
        %v427 = vpop.f32.mrf.mxu0
        %428 = vmatprep.mubr.f32.mxu0 0.0
        %429 = vmatmul.mubr.f32.gmra.mxu0 %v347
        %v430 = vpop.f32.mrf.mxu0
        %v431 = vadd.f32 0.0, %v430
        %v432 = vpop.f32.mrf.mxu0
        %433 = vdwg.mxu0
        %vm434 = vcmask 64512
        %435 = vst.msk [vmem:[%s221] sm:$0xff] %vm434, %v319
        %436 = vst.msk [vmem:[%s221 + $0x8] sm:$0xff] %vm434, %v324
        %437 = vst.msk [vmem:[%s221 + $0x10] sm:$0xff] %vm434, %v329
        %438 = vst.msk [vmem:[%s221 + $0x18] sm:$0xff] %vm434, %v334
        %s439 = scalar_lea.vmem %s221, 32
        %440 = vst.msk [vmem:[%s439] sm:$0xff] %vm434, %v416
        %441 = vst.msk [vmem:[%s439 + $0x8] sm:$0xff] %vm434, %v421
        %442 = vst.msk [vmem:[%s439 + $0x10] sm:$0xff] %vm434, %v426
        %443 = vst.msk [vmem:[%s439 + $0x18] sm:$0xff] %vm434, %v431
        %448 = vrot.lane.b32.xlu0 %v319, 120
        %v449 = vpop.permute.xlu0 %448
        %450 = vrot.lane.b32.xlu0 %v324, 120
        %v451 = vpop.permute.xlu0 %450
        %452 = vrot.lane.b32.xlu0 %v329, 120
        %v453 = vpop.permute.xlu0 %452
        %454 = vrot.lane.b32.xlu0 %v334, 120
        %v455 = vpop.permute.xlu0 %454
        %s460 = scalar_lea.vmem %s221, 64
        %461 = vst.msk [vmem:[%s460] sm:$0xff] %vm434, %v449
        %462 = vst.msk [vmem:[%s460 + $0x8] sm:$0xff] %vm434, %v451
        %463 = vst.msk [vmem:[%s460 + $0x10] sm:$0xff] %vm434, %v453
        %464 = vst.msk [vmem:[%s460 + $0x18] sm:$0xff] %vm434, %v455
        %469 = vrot.lane.b32.xlu0 %v416, 120
        %v470 = vpop.permute.xlu0 %469
        %471 = vrot.lane.b32.xlu0 %v421, 120
        %v472 = vpop.permute.xlu0 %471
        %473 = vrot.lane.b32.xlu0 %v426, 120
        %v474 = vpop.permute.xlu0 %473
        %475 = vrot.lane.b32.xlu0 %v431, 120
        %v476 = vpop.permute.xlu0 %475
        %s481 = scalar_lea.vmem %s221, 96
        %482 = vst.msk [vmem:[%s481] sm:$0xff] %vm434, %v470
        %483 = vst.msk [vmem:[%s481 + $0x8] sm:$0xff] %vm434, %v472
        %484 = vst.msk [vmem:[%s481 + $0x10] sm:$0xff] %vm434, %v474
        %485 = vst.msk [vmem:[%s481 + $0x18] sm:$0xff] %vm434, %v476
        %p486 = scmp.lt.s32.totalorder %s22, 1
        %s487 = scalar_select %p486, %s22, 1
        %p488 = scmp.lt.s32.totalorder %s23, 0
        %s489 = scalar_select %p488, %s23, 0
        %p490 = scmp.lt.s32.totalorder %s24, 0
        %s491 = scalar_select %p490, %s24, 0
        %s492 = sadd.s32 %s491, %s489
        %s493 = smul.addr %s487, 16
        %s494 = sadd.s32 %s492, %s493
        %s495 = smul.addr %s494, 8
        %s496 = scalar_lea.vmem %s2, %s495
        // Predicated region
        $region37: #{tpu_custom_call.1} parent=27 // pred_check
          %p497 = pneg %p109
        $region38: #{tpu_custom_call.1} parent=27 // pred_check_branch
          %499 = sbr.rel (%p497) target = $region40
        $region39: #{tpu_custom_call.1} parent=27 // pred_region
          _
        $region40: #{tpu_custom_call.1} parent=27 // pred_fallthru
          _
      $region28: #{tpu_custom_call.1} parent=5 // pred_fallthru
        _
      %p500 = scmp.le.s32.totalorder 2, %s12
      // Predicated region
      $region41: #{tpu_custom_call.1} parent=5 // pred_check
        %p501 = pneg %p500
      $region42: #{tpu_custom_call.1} parent=5 // pred_check_branch
        %503 = sbr.rel (%p501) target = $region44
      $region43: #{tpu_custom_call.1} parent=5 // pred_region
        %s504 = ssub.s32 %s12, 2
        // Predicated region
        $region45: #{tpu_custom_call.1} parent=43 // pred_check
          %p505 = pneg %p115
        $region46: #{tpu_custom_call.1} parent=43 // pred_check_branch
          %507 = sbr.rel (%p505) target = $region48
        $region47: #{tpu_custom_call.1} parent=43 // pred_region
          %p508 = scmp.lt.s32.totalorder %s25, 1
          %s509 = scalar_select %p508, %s25, 1
          %p510 = scmp.lt.s32.totalorder %s26, 0
          %s511 = scalar_select %p510, %s26, 0
          %p512 = scmp.lt.s32.totalorder %s27, 0
          %s513 = scalar_select %p512, %s27, 0
          %s514 = sadd.s32 %s513, %s511
          %s515 = smul.addr %s509, 16
          %s516 = sadd.s32 %s514, %s515
          %s517 = smul.addr %s516, 8
          %s518 = scalar_lea.vmem %s2, %s517
        $region48: #{tpu_custom_call.1} parent=43 // pred_fallthru
          _
      $region44: #{tpu_custom_call.1} parent=5 // pred_fallthru
        _
    $region6: #{tpu_custom_call.1} parent=1 // loop_footer
      %s16 = sadd.s32 1, %s12
    $region7: #{tpu_custom_call.1} parent=1 // loop_footer_branch
      %11 = sbr.rel target = $region3
    $region8: #{tpu_custom_call.1} parent=1 // loop_exit
      _
    %519 = vsyncpa [#allocation3], 1
    %s520 = scalar_lea.sflag [#allocation3], 1
    %521 = vsyncpa %s520, 1
    %522 = vsyncpa [#allocation5], 1

</llo_original>
